<compile_context>
chip_gen: v6e
topology: v6e:2x2x1
jax: 0.10.0
libtpu: 0.0.40
codegen_flags: <defaults>
</compile_context>

<pallas_src>
import functools

import jax
import jax.numpy as jnp
from jax.experimental import pallas as pl
from jax.experimental.pallas import tpu as pltpu


def _fc_res_kernel(x_ref, w1_ref, b1_ref, w2_ref, b2_ref, o_ref):
    # y = relu(x @ W1^T + b1): bf16 MXU operands, f32 accumulation.
    y = jnp.dot(x_ref[...].astype(jnp.bfloat16), w1_ref[...],
                preferred_element_type=jnp.float32)
    y = jnp.maximum(y + b1_ref[...], 0.0)

    # y = relu(y @ W2^T + b2)
    y = jnp.dot(y.astype(jnp.bfloat16), w2_ref[...],
                preferred_element_type=jnp.float32)
    y = jnp.maximum(y + b2_ref[...], 0.0)

    # Residual in f32: re-read the VMEM-resident x tile (cheap vld) instead of
    # keeping a (tm, D) f32 value live across both matmuls.
    o_ref[...] = (x_ref[...] + y).astype(o_ref.dtype)


def _round_up(n, m):
    return -(-n // m) * m


def _num_tensorcores_per_chip():
    """Best-effort chip detection; only used to decide whether splitting the batch
    into >=2 tiles buys anything (dual-TC v7x) or just adds per-step overhead."""
    try:
        kind = jax.devices()[0].device_kind.lower()
        if "v7" in kind or "7x" in kind:
            return 2
    except Exception:
        pass
    return 1


# 4096 rows * 128 feat * 4 B = 2 MiB per tile; double-buffered in + out = 8 MiB,
# plus ~128 KiB of resident bf16 weights -> fits the default scoped VMEM on
# v5e (16 MiB) / v6e (32 MiB) / v7x (32 MiB).
_TM_MAX = 4096
_MIN_SPLIT_TM = 256


def _pick_tm(batch):
    """Largest batch tile (multiple of 8, capped at _TM_MAX). On dual-TC chips split
    into two even tiles only when each half stays >= _MIN_SPLIT_TM rows."""
    b8 = _round_up(batch, 8)
    if b8 > _TM_MAX:
        return _TM_MAX
    if _num_tensorcores_per_chip() >= 2 and b8 >= 2 * _MIN_SPLIT_TM:
        return _round_up(pl.cdiv(b8, 2), 8)
    return b8


def prepare_fc_res_params(w1, b1, w2, b2):
    """One-time weight prep (hoist out of the hot path): PyTorch (out, in) weights are
    transposed to (in, out) and cast to bf16 for the MXU; biases become (1, D) f32."""
    D = w1.shape[0]
    return (w1.T.astype(jnp.bfloat16),
            b1.reshape(1, D).astype(jnp.float32),
            w2.T.astype(jnp.bfloat16),
            b2.reshape(1, D).astype(jnp.float32))


@functools.partial(jax.jit, static_argnames=("tm",))
def _fc_res_call(x, w1_t, b1_2d, w2_t, b2_2d, *, tm):
    B, D = x.shape
    grid = (pl.cdiv(B, tm),)   # partial last tile: OOB rows are masked on store
    return pl.pallas_call(
        _fc_res_kernel,
        out_shape=jax.ShapeDtypeStruct((B, D), x.dtype),
        grid_spec=pltpu.PrefetchScalarGridSpec(
            num_scalar_prefetch=0,
            grid=grid,
            in_specs=[
                pl.BlockSpec((tm, D), lambda i: (i, 0)),   # x tile (streamed)
                pl.BlockSpec((D, D), lambda i: (0, 0)),    # W1^T (bf16, VMEM-resident)
                pl.BlockSpec((1, D), lambda i: (0, 0)),    # b1 (f32, resident)
                pl.BlockSpec((D, D), lambda i: (0, 0)),    # W2^T (bf16, resident)
                pl.BlockSpec((1, D), lambda i: (0, 0)),    # b2 (f32, resident)
            ],
            out_specs=pl.BlockSpec((tm, D), lambda i: (i, 0)),
        ),
        compiler_params=pltpu.CompilerParams(
            dimension_semantics=("parallel",)),
    )(x, w1_t, b1_2d, w2_t, b2_2d)


def make_fc_res_layer(w1, b1, w2, b2):
    """Returns a callable with the pre-transposed bf16 weights cached across calls."""
    params = prepare_fc_res_params(w1, b1, w2, b2)

    def apply(x, *, tm=None):
        t = tm if tm is not None else _pick_tm(x.shape[0])
        return _fc_res_call(x, *params, tm=t)

    return apply


def fc_res_layer(x, w1, b1, w2, b2, *, tm=None):
    """Convenience one-shot wrapper. x: (B, D) f32; w1, w2: (D, D) PyTorch (out, in)."""
    return make_fc_res_layer(w1, b1, w2, b2)(x, tm=tm)


def fc_res_layer_ref_f32(x, w1, b1, w2, b2):
    y = jnp.maximum(x @ w1.T + b1, 0.0)
    y = jnp.maximum(y @ w2.T + b2, 0.0)
    return x + y


def fc_res_layer_ref_mixed(x, w1, b1, w2, b2):
    """Reference with the same bf16-operand / f32-accumulate recipe as the kernel."""
    w1t = w1.T.astype(jnp.bfloat16)
    w2t = w2.T.astype(jnp.bfloat16)
    y = jnp.dot(x.astype(jnp.bfloat16), w1t, preferred_element_type=jnp.float32)
    y = jnp.maximum(y + b1, 0.0)
    y = jnp.dot(y.astype(jnp.bfloat16), w2t, preferred_element_type=jnp.float32)
    y = jnp.maximum(y + b2, 0.0)
    return x + y


if __name__ == "__main__":
    linear_size = 128   # module default (keeps feature dim lane-aligned)

    key = jax.random.PRNGKey(0)
    kx, k1, kb1, k2, kb2 = jax.random.split(key, 5)

    # nn.Linear default init ~ U(-1/sqrt(fan_in), 1/sqrt(fan_in)); deterministic here.
    bound = 1.0 / jnp.sqrt(jnp.float32(linear_size))
    w1 = jax.random.uniform(k1, (linear_size, linear_size), jnp.float32, -bound, bound)
    b1 = jax.random.uniform(kb1, (linear_size,), jnp.float32, -bound, bound)
    w2 = jax.random.uniform(k2, (linear_size, linear_size), jnp.float32, -bound, bound)
    b2 = jax.random.uniform(kb2, (linear_size,), jnp.float32, -bound, bound)

    layer = make_fc_res_layer(w1, b1, w2, b2)   # weight prep happens once, cached

    # batch=64 is the clean single-tile path; batch=50 exercises the masked partial tile.
    for batch in (64, 50):
        x = jax.random.normal(kx, (batch, linear_size), dtype=jnp.float32)
        out = jax.block_until_ready(layer(x))
        assert out.shape == (batch, linear_size)

        # Tight check vs a reference using the same mixed-precision recipe.
        ref_mixed = fc_res_layer_ref_mixed(x, w1, b1, w2, b2)
        assert jnp.allclose(out, ref_mixed, atol=1e-4, rtol=1e-4), \
            f"mismatch vs mixed-precision reference (batch={batch})"

        # Loose check vs the full-f32 module semantics (bf16 MXU operands round inputs).
        ref_f32 = fc_res_layer_ref_f32(x, w1, b1, w2, b2)
        assert jnp.allclose(out, ref_f32, atol=5e-2, rtol=5e-2), \
            f"mismatch vs f32 reference (batch={batch})"

    print("KERNEL_OK")
</pallas_src>

<mosaic_0001>
module attributes {stable_mosaic.version = 11 : i64} {
  func.func @_fc_res_kernel(%arg0: i32, %arg1: memref<64x128xf32, #tpu.memory_space<vmem>>, %arg2: memref<128x128xbf16, #tpu.memory_space<vmem>>, %arg3: memref<1x128xf32, #tpu.memory_space<vmem>>, %arg4: memref<128x128xbf16, #tpu.memory_space<vmem>>, %arg5: memref<1x128xf32, #tpu.memory_space<vmem>>, %arg6: memref<64x128xf32, #tpu.memory_space<vmem>>) attributes {dimension_semantics = [#tpu.dimension_semantics<parallel>], iteration_bounds = array<i64: 1>, scalar_prefetch = 0 : i64, scratch_operands = 0 : i64, tpu.core_type = #tpu.core_type<tc>, window_params = [{transform_indices = @transform_0, window_bounds = array<i64: 64, 128>}, {pipeline_mode = #tpu.pipeline_mode<synchronous>, transform_indices = @transform_1, window_bounds = array<i64: 128, 128>}, {pipeline_mode = #tpu.pipeline_mode<synchronous>, transform_indices = @transform_2, window_bounds = array<i64: 1, 128>}, {pipeline_mode = #tpu.pipeline_mode<synchronous>, transform_indices = @transform_3, window_bounds = array<i64: 128, 128>}, {pipeline_mode = #tpu.pipeline_mode<synchronous>, transform_indices = @transform_4, window_bounds = array<i64: 1, 128>}, {transform_indices = @transform_5, window_bounds = array<i64: 64, 128>}]} {
    %c0 = arith.constant 0 : index
    %c0_0 = arith.constant 0 : index
    %0 = vector.load %arg1[%c0, %c0_0] : memref<64x128xf32, #tpu.memory_space<vmem>>, vector<64x128xf32>
    %1 = arith.truncf %0 : vector<64x128xf32> to vector<64x128xbf16>
    %c0_1 = arith.constant 0 : index
    %c0_2 = arith.constant 0 : index
    %2 = vector.load %arg2[%c0_1, %c0_2] : memref<128x128xbf16, #tpu.memory_space<vmem>>, vector<128x128xbf16>
    %cst = arith.constant dense<0.000000e+00> : vector<64x128xf32>
    %3 = tpu.matmul %1, %2, %cst {dimension_numbers = #tpu.dot_dimension_numbers<[1], [0], [0], [1], [0, 0, 1, 1], [], []>} : vector<64x128xbf16>, vector<128x128xbf16>, vector<64x128xf32> -> vector<64x128xf32>
    %c0_3 = arith.constant 0 : index
    %c0_4 = arith.constant 0 : index
    %4 = vector.load %arg3[%c0_3, %c0_4] : memref<1x128xf32, #tpu.memory_space<vmem>>, vector<1x128xf32>
    %5 = vector.broadcast %4 : vector<1x128xf32> to vector<64x128xf32>
    %6 = arith.addf %3, %5 : vector<64x128xf32>
    %cst_5 = arith.constant 0.000000e+00 : f32
    %7 = vector.broadcast %cst_5 : f32 to vector<64x128xf32>
    %8 = arith.maximumf %6, %7 : vector<64x128xf32>
    %9 = arith.truncf %8 : vector<64x128xf32> to vector<64x128xbf16>
    %c0_6 = arith.constant 0 : index
    %c0_7 = arith.constant 0 : index
    %10 = vector.load %arg4[%c0_6, %c0_7] : memref<128x128xbf16, #tpu.memory_space<vmem>>, vector<128x128xbf16>
    %cst_8 = arith.constant dense<0.000000e+00> : vector<64x128xf32>
    %11 = tpu.matmul %9, %10, %cst_8 {dimension_numbers = #tpu.dot_dimension_numbers<[1], [0], [0], [1], [0, 0, 1, 1], [], []>} : vector<64x128xbf16>, vector<128x128xbf16>, vector<64x128xf32> -> vector<64x128xf32>
    %c0_9 = arith.constant 0 : index
    %c0_10 = arith.constant 0 : index
    %12 = vector.load %arg5[%c0_9, %c0_10] : memref<1x128xf32, #tpu.memory_space<vmem>>, vector<1x128xf32>
    %13 = vector.broadcast %12 : vector<1x128xf32> to vector<64x128xf32>
    %14 = arith.addf %11, %13 : vector<64x128xf32>
    %cst_11 = arith.constant 0.000000e+00 : f32
    %15 = vector.broadcast %cst_11 : f32 to vector<64x128xf32>
    %16 = arith.maximumf %14, %15 : vector<64x128xf32>
    %c0_12 = arith.constant 0 : index
    %c0_13 = arith.constant 0 : index
    %17 = vector.load %arg1[%c0_12, %c0_13] : memref<64x128xf32, #tpu.memory_space<vmem>>, vector<64x128xf32>
    %18 = arith.addf %17, %16 : vector<64x128xf32>
    %c0_14 = arith.constant 0 : index
    %c0_15 = arith.constant 0 : index
    %19 = vector.load %arg6[%c0_14, %c0_15] : memref<64x128xf32, #tpu.memory_space<vmem>>, vector<64x128xf32>
    tpu.vector_store %arg6[%c0_14, %c0_15], %18 {strides = array<i32>} : memref<64x128xf32, #tpu.memory_space<vmem>>, vector<64x128xf32>,
    return
  }
  func.func @transform_0(%arg0: i32) -> (i32, i32) {
    %c0_i32 = arith.constant 0 : i32
    %c0_i32_0 = arith.constant 0 : i32
    return %arg0, %c0_i32 : i32, i32
  }
  func.func @transform_1(%arg0: i32) -> (i32, i32) {
    %c0_i32 = arith.constant 0 : i32
    %c0_i32_0 = arith.constant 0 : i32
    %c0_i32_1 = arith.constant 0 : i32
    return %c0_i32, %c0_i32_0 : i32, i32
  }
  func.func @transform_2(%arg0: i32) -> (i32, i32) {
    %c0_i32 = arith.constant 0 : i32
    %c0_i32_0 = arith.constant 0 : i32
    %c0_i32_1 = arith.constant 0 : i32
    return %c0_i32, %c0_i32_0 : i32, i32
  }
  func.func @transform_3(%arg0: i32) -> (i32, i32) {
    %c0_i32 = arith.constant 0 : i32
    %c0_i32_0 = arith.constant 0 : i32
    %c0_i32_1 = arith.constant 0 : i32
    return %c0_i32, %c0_i32_0 : i32, i32
  }
  func.func @transform_4(%arg0: i32) -> (i32, i32) {
    %c0_i32 = arith.constant 0 : i32
    %c0_i32_0 = arith.constant 0 : i32
    %c0_i32_1 = arith.constant 0 : i32
    return %c0_i32, %c0_i32_0 : i32, i32
  }
  func.func @transform_5(%arg0: i32) -> (i32, i32) {
    %c0_i32 = arith.constant 0 : i32
    %c0_i32_0 = arith.constant 0 : i32
    return %arg0, %c0_i32 : i32, i32
  }
}

</mosaic_0001>

<llo_original>
// kernel: _fc_res_call.1
$region0: #{_fc_res_call.1}
  #allocation0 [shape = 'u32[]', space=smem, size = 0x4, offset = 0x4, fixed_abs, tag = 'smem constant byte address 0x4 - core index']
  #allocation1 [shape = 'u32[144,128]{1,0:T(1,128)}', space=vmem, size = 0x12000, scoped, tag = 'internal scratch']
  %s0 = inlined_call_operand.hbm [shape: f32[64,128], index: 0, kind: input, shape index: {}]
  %s1 = inlined_call_operand.hbm [shape: bf16[128,128], index: 1, kind: input, shape index: {}]
  %s2 = inlined_call_operand.vmem [shape: f32[1,128], index: 2, kind: input, shape index: {}]
  %s3 = inlined_call_operand.hbm [shape: bf16[128,128], index: 3, kind: input, shape index: {}]
  %s4 = inlined_call_operand.vmem [shape: f32[1,128], index: 4, kind: input, shape index: {}]
  %s5 = inlined_call_operand.hbm [shape: f32[64,128], index: 5, kind: output, shape index: {}]
  %s6 = sld [smem:[#allocation0]]
  $region42: #{_fc_res_call.1} parent=0
    _
  %s8 = ssub.s32 1, %s6
  %s9 = scalar_select 0, %s8, %s6
  $region1: #{_fc_res_call.1} parent=0
    #allocation2 [shape = 'u8[32768]{0}', space=vmem, size = 0x8000, scoped, tag = 'input window, operand 0, single buffered']
    #allocation3 [shape = 's32[1]{0}', space=sflag, size = 0x4, scoped, tag = 'scoped memory for _fc_res_call.1']
    #allocation4 [shape = 's32[1]{0}', space=sflag, size = 0x4, scoped, tag = 'scoped memory for _fc_res_call.1']
    #allocation5 [shape = 'u8[32768]{0}', space=vmem, size = 0x8000, scoped, tag = 'input window, operand 1, single buffered']
    #allocation6 [shape = 's32[1]{0}', space=sflag, size = 0x4, scoped, tag = 'scoped memory for _fc_res_call.1']
    #allocation7 [shape = 'u8[32768]{0}', space=vmem, size = 0x8000, scoped, tag = 'input window, operand 3, single buffered']
    #allocation8 [shape = 'u8[32768]{0}', space=vmem, size = 0x8000, scoped, tag = 'output window, operand 0, single buffered']
    %10 = vsyncpa [#allocation3], 0
    %11 = vsyncpa [#allocation6], 0
    %12 = vsyncpa [#allocation4], 0
    // Predicated region
    $region2: #{_fc_res_call.1} parent=1 // pred_check
      _
    $region3: #{_fc_res_call.1} parent=1 // pred_check_branch
      %14 = sbr.rel (0) target = $region5
    $region4: #{_fc_res_call.1} parent=1 // pred_region
      %s16 = ssub.s32 1024, 1024
      %17 = vsyncadd [#allocation3], %s16
      %s18 = sshll.u32 [#allocation2], 4
      %s19 = int_to_ptr.vmem [resolvable:$true] %s18
      %24 = dma.hbm_to_vmem [thread:$0]  %s0, 1024, %s19, [#allocation3], 128, 128, 8
    $region5: #{_fc_res_call.1} parent=1 // pred_fallthru
      _
    // Predicated region
    $region6: #{_fc_res_call.1} parent=1 // pred_check
      _
    $region7: #{_fc_res_call.1} parent=1 // pred_check_branch
      %26 = sbr.rel (0) target = $region9
    $region8: #{_fc_res_call.1} parent=1 // pred_region
      %s28 = ssub.s32 1024, 1024
      %29 = vsyncadd [#allocation6], %s28
      %s30 = sshll.u32 [#allocation5], 4
      %s31 = int_to_ptr.vmem [resolvable:$true] %s30
      %36 = dma.hbm_to_vmem [thread:$0]  %s1, 1024, %s31, [#allocation6], 64, 64, 4
    $region9: #{_fc_res_call.1} parent=1 // pred_fallthru
      _
    // Predicated region
    $region10: #{_fc_res_call.1} parent=1 // pred_check
      _
    $region11: #{_fc_res_call.1} parent=1 // pred_check_branch
      %38 = sbr.rel (0) target = $region13
    $region12: #{_fc_res_call.1} parent=1 // pred_region
      _
    $region13: #{_fc_res_call.1} parent=1 // pred_fallthru
      _
    // Predicated region
    $region14: #{_fc_res_call.1} parent=1 // pred_check
      _
    $region15: #{_fc_res_call.1} parent=1 // pred_check_branch
      %40 = sbr.rel (0) target = $region17
    $region16: #{_fc_res_call.1} parent=1 // pred_region
      %s42 = ssub.s32 1024, 1024
      %43 = vsyncadd [#allocation6], %s42
      %s44 = sshll.u32 [#allocation7], 4
      %s45 = int_to_ptr.vmem [resolvable:$true] %s44
      %50 = dma.hbm_to_vmem [thread:$0]  %s3, 1024, %s45, [#allocation6], 64, 64, 4
    $region17: #{_fc_res_call.1} parent=1 // pred_fallthru
      _
    // Predicated region
    $region18: #{_fc_res_call.1} parent=1 // pred_check
      _
    $region19: #{_fc_res_call.1} parent=1 // pred_check_branch
      %52 = sbr.rel (0) target = $region21
    $region20: #{_fc_res_call.1} parent=1 // pred_region
      _
    $region21: #{_fc_res_call.1} parent=1 // pred_fallthru
      _
    // Predicated region
    $region22: #{_fc_res_call.1} parent=1 // pred_check
      _
    $region23: #{_fc_res_call.1} parent=1 // pred_check_branch
      %54 = sbr.rel (0) target = $region25
    $region24: #{_fc_res_call.1} parent=1 // pred_region
      %55 = dma.done [#allocation3], 1024
    $region25: #{_fc_res_call.1} parent=1 // pred_fallthru
      _
    // Predicated region
    $region26: #{_fc_res_call.1} parent=1 // pred_check
      _
    $region27: #{_fc_res_call.1} parent=1 // pred_check_branch
      %57 = sbr.rel (0) target = $region29
    $region28: #{_fc_res_call.1} parent=1 // pred_region
      %58 = dma.done [#allocation6], 1024
    $region29: #{_fc_res_call.1} parent=1 // pred_fallthru
      _
    // Predicated region
    $region30: #{_fc_res_call.1} parent=1 // pred_check
      _
    $region31: #{_fc_res_call.1} parent=1 // pred_check_branch
      %60 = sbr.rel (0) target = $region33
    $region32: #{_fc_res_call.1} parent=1 // pred_region
      %61 = dma.done [#allocation6], 1024
    $region33: #{_fc_res_call.1} parent=1 // pred_fallthru
      _
    %v63 = vld [vmem:[#allocation2] sm:$0xff]
    %v64 = vld [vmem:[#allocation2 + $0x8] sm:$0xff]
    %v65 = vld [vmem:[#allocation2 + $0x10] sm:$0xff]
    %v66 = vld [vmem:[#allocation2 + $0x18] sm:$0xff]
    %v67 = vld [vmem:[#allocation2 + $0x20] sm:$0xff]
    %v68 = vld [vmem:[#allocation2 + $0x28] sm:$0xff]
    %v69 = vld [vmem:[#allocation2 + $0x30] sm:$0xff]
    %v70 = vld [vmem:[#allocation2 + $0x38] sm:$0xff]
    %v71 = vpack.c.bf16 %v64, %v63
    %v72 = vpack.c.bf16 %v66, %v65
    %v73 = vpack.c.bf16 %v68, %v67
    %v74 = vpack.c.bf16 %v70, %v69
    %v75 = vld [vmem:[#allocation5] sm:$0xf]
    %v76 = vld [vmem:[#allocation5 + $0x4] sm:$0xf]
    %v77 = vld [vmem:[#allocation5 + $0x8] sm:$0xf]
    %v78 = vld [vmem:[#allocation5 + $0xc] sm:$0xf]
    %v79 = vld [vmem:[#allocation5 + $0x10] sm:$0xf]
    %v80 = vld [vmem:[#allocation5 + $0x14] sm:$0xf]
    %v81 = vld [vmem:[#allocation5 + $0x18] sm:$0xf]
    %v82 = vld [vmem:[#allocation5 + $0x1c] sm:$0xf]
    %v83 = vld [vmem:[#allocation5 + $0x20] sm:$0xf]
    %v84 = vld [vmem:[#allocation5 + $0x24] sm:$0xf]
    %v85 = vld [vmem:[#allocation5 + $0x28] sm:$0xf]
    %v86 = vld [vmem:[#allocation5 + $0x2c] sm:$0xf]
    %v87 = vld [vmem:[#allocation5 + $0x30] sm:$0xf]
    %v88 = vld [vmem:[#allocation5 + $0x34] sm:$0xf]
    %v89 = vld [vmem:[#allocation5 + $0x38] sm:$0xf]
    %v90 = vld [vmem:[#allocation5 + $0x3c] sm:$0xf]
    %v91 = vld [vmem:[%s2] sm:$0x1]
    %v93 = vlaneseq
    %v94 = vshrl.u32 %v93, 7
    %v95 = vsub.s32 0, %v94
    %v96 = vrot.slane %v91, %v95
    %v114 = vunpack.c.l.b16 %v75
    %v115 = vunpack.c.l.b16 %v76
    %v116 = vunpack.c.l.b16 %v77
    %v117 = vunpack.c.l.b16 %v78
    %v118 = vunpack.c.l.b16 %v79
    %v119 = vunpack.c.l.b16 %v80
    %v120 = vunpack.c.l.b16 %v81
    %v121 = vunpack.c.l.b16 %v82
    %v122 = vunpack.c.l.b16 %v83
    %v123 = vunpack.c.l.b16 %v84
    %v124 = vunpack.c.l.b16 %v85
    %v125 = vunpack.c.l.b16 %v86
    %v126 = vunpack.c.l.b16 %v87
    %v127 = vunpack.c.l.b16 %v88
    %v128 = vunpack.c.l.b16 %v89
    %v129 = vunpack.c.l.b16 %v90
    %v130 = vpack.c.b16 %v115, %v114
    %v131 = vpack.c.b16 %v117, %v116
    %v132 = vpack.c.b16 %v119, %v118
    %v133 = vpack.c.b16 %v121, %v120
    %v134 = vpack.c.b16 %v123, %v122
    %v135 = vpack.c.b16 %v125, %v124
    %v136 = vpack.c.b16 %v127, %v126
    %v137 = vpack.c.b16 %v129, %v128
    %146 = vmatprep.subr.bf16.mxu0 0
    %147 = vmatpush1.bf16.msra.mxu0 %v137
    %148 = vmatprep.subr.bf16.mxu0 0
    %149 = vmatpush1.bf16.msra.mxu0 %v136
    %150 = vmatprep.subr.bf16.mxu0 0
    %151 = vmatpush1.bf16.msra.mxu0 %v135
    %152 = vmatprep.subr.bf16.mxu0 0
    %153 = vmatpush1.bf16.msra.mxu0 %v134
    %154 = vmatprep.subr.bf16.mxu0 0
    %155 = vmatpush1.bf16.msra.mxu0 %v133
    %156 = vmatprep.subr.bf16.mxu0 0
    %157 = vmatpush1.bf16.msra.mxu0 %v132
    %158 = vmatprep.subr.bf16.mxu0 0
    %159 = vmatpush1.bf16.msra.mxu0 %v131
    %160 = vmatprep.subr.bf16.mxu0 0
    %161 = vmatpush1.bf16.msra.mxu0 %v130
    %162 = vmatprep.subr.bf16.mxu0 0
    %163 = vmatpush2.bf16.msra.mxu0 0
    %164 = vmatprep.subr.bf16.mxu0 0
    %165 = vmatpush2.bf16.msra.mxu0 0
    %166 = vmatprep.subr.bf16.mxu0 0
    %167 = vmatpush2.bf16.msra.mxu0 0
    %168 = vmatprep.subr.bf16.mxu0 0
    %169 = vmatpush2.bf16.msra.mxu0 0
    %170 = vmatprep.subr.bf16.mxu0 0
    %171 = vmatpush2.bf16.msra.mxu0 0
    %172 = vmatprep.subr.bf16.mxu0 0
    %173 = vmatpush2.bf16.msra.mxu0 0
    %174 = vmatprep.subr.bf16.mxu0 0
    %175 = vmatpush2.bf16.msra.mxu0 0
    %176 = vmatprep.subr.bf16.mxu0 0
    %177 = vmatpush2.bf16.msra.mxu0 0
    %178 = vmatprep.mubr.bf16.mxu0 0
    %179 = vmatmul.mubr.bf16.gmra.mxu0 %v71
    %v180 = vpop.f32.mrf.mxu0
    %v181 = vadd.f32 %v96, %v180
    %v182 = vpop.f32.mrf.mxu0
    %v183 = vpop.f32.mrf.mxu0
    %v184 = vadd.f32 %v96, %v183
    %v185 = vpop.f32.mrf.mxu0
    %186 = vmatprep.mubr.bf16.mxu0 0
    %187 = vmatmul.mubr.bf16.gmra.mxu0 %v72
    %v188 = vpop.f32.mrf.mxu0
    %v189 = vadd.f32 %v96, %v188
    %v190 = vpop.f32.mrf.mxu0
    %v191 = vpop.f32.mrf.mxu0
    %v192 = vadd.f32 %v96, %v191
    %v193 = vpop.f32.mrf.mxu0
    %194 = vmatprep.mubr.bf16.mxu0 0
    %195 = vmatmul.mubr.bf16.gmra.mxu0 %v73
    %v196 = vpop.f32.mrf.mxu0
    %v197 = vadd.f32 %v96, %v196
    %v198 = vpop.f32.mrf.mxu0
    %v199 = vpop.f32.mrf.mxu0
    %v200 = vadd.f32 %v96, %v199
    %v201 = vpop.f32.mrf.mxu0
    %202 = vmatprep.mubr.bf16.mxu0 0
    %203 = vmatmul.mubr.bf16.gmra.mxu0 %v74
    %v204 = vpop.f32.mrf.mxu0
    %v205 = vadd.f32 %v96, %v204
    %v206 = vpop.f32.mrf.mxu0
    %v207 = vpop.f32.mrf.mxu0
    %v208 = vadd.f32 %v96, %v207
    %v209 = vpop.f32.mrf.mxu0
    %210 = vdwg.mxu0
    %v211 = vmax.f32 %v181, 0.0
    %v212 = vmax.f32 %v184, 0.0
    %v213 = vmax.f32 %v189, 0.0
    %v214 = vmax.f32 %v192, 0.0
    %v215 = vmax.f32 %v197, 0.0
    %v216 = vmax.f32 %v200, 0.0
    %v217 = vmax.f32 %v205, 0.0
    %v218 = vmax.f32 %v208, 0.0
    %v219 = vpack.c.bf16 %v212, %v211
    %v220 = vpack.c.bf16 %v214, %v213
    %v221 = vpack.c.bf16 %v216, %v215
    %v222 = vpack.c.bf16 %v218, %v217
    %v223 = vld [vmem:[#allocation7] sm:$0xf]
    %v224 = vld [vmem:[#allocation7 + $0x4] sm:$0xf]
    %v225 = vld [vmem:[#allocation7 + $0x8] sm:$0xf]
    %v226 = vld [vmem:[#allocation7 + $0xc] sm:$0xf]
    %v227 = vld [vmem:[#allocation7 + $0x10] sm:$0xf]
    %v228 = vld [vmem:[#allocation7 + $0x14] sm:$0xf]
    %v229 = vld [vmem:[#allocation7 + $0x18] sm:$0xf]
    %v230 = vld [vmem:[#allocation7 + $0x1c] sm:$0xf]
    %v231 = vld [vmem:[#allocation7 + $0x20] sm:$0xf]
    %v232 = vld [vmem:[#allocation7 + $0x24] sm:$0xf]
    %v233 = vld [vmem:[#allocation7 + $0x28] sm:$0xf]
    %v234 = vld [vmem:[#allocation7 + $0x2c] sm:$0xf]
    %v235 = vld [vmem:[#allocation7 + $0x30] sm:$0xf]
    %v236 = vld [vmem:[#allocation7 + $0x34] sm:$0xf]
    %v237 = vld [vmem:[#allocation7 + $0x38] sm:$0xf]
    %v238 = vld [vmem:[#allocation7 + $0x3c] sm:$0xf]
    %v239 = vld [vmem:[%s4] sm:$0x1]
    %v241 = vlaneseq
    %v242 = vshrl.u32 %v241, 7
    %v243 = vsub.s32 0, %v242
    %v244 = vrot.slane %v239, %v243
    %v262 = vunpack.c.l.b16 %v223
    %v263 = vunpack.c.l.b16 %v224
    %v264 = vunpack.c.l.b16 %v225
    %v265 = vunpack.c.l.b16 %v226
    %v266 = vunpack.c.l.b16 %v227
    %v267 = vunpack.c.l.b16 %v228
    %v268 = vunpack.c.l.b16 %v229
    %v269 = vunpack.c.l.b16 %v230
    %v270 = vunpack.c.l.b16 %v231
    %v271 = vunpack.c.l.b16 %v232
    %v272 = vunpack.c.l.b16 %v233
    %v273 = vunpack.c.l.b16 %v234
    %v274 = vunpack.c.l.b16 %v235
    %v275 = vunpack.c.l.b16 %v236
    %v276 = vunpack.c.l.b16 %v237
    %v277 = vunpack.c.l.b16 %v238
    %v278 = vpack.c.b16 %v263, %v262
    %v279 = vpack.c.b16 %v265, %v264
    %v280 = vpack.c.b16 %v267, %v266
    %v281 = vpack.c.b16 %v269, %v268
    %v282 = vpack.c.b16 %v271, %v270
    %v283 = vpack.c.b16 %v273, %v272
    %v284 = vpack.c.b16 %v275, %v274
    %v285 = vpack.c.b16 %v277, %v276
    %294 = vmatprep.subr.bf16.mxu0 0
    %295 = vmatpush1.bf16.msra.mxu0 %v285
    %296 = vmatprep.subr.bf16.mxu0 0
    %297 = vmatpush1.bf16.msra.mxu0 %v284
    %298 = vmatprep.subr.bf16.mxu0 0
    %299 = vmatpush1.bf16.msra.mxu0 %v283
    %300 = vmatprep.subr.bf16.mxu0 0
    %301 = vmatpush1.bf16.msra.mxu0 %v282
    %302 = vmatprep.subr.bf16.mxu0 0
    %303 = vmatpush1.bf16.msra.mxu0 %v281
    %304 = vmatprep.subr.bf16.mxu0 0
    %305 = vmatpush1.bf16.msra.mxu0 %v280
    %306 = vmatprep.subr.bf16.mxu0 0
    %307 = vmatpush1.bf16.msra.mxu0 %v279
    %308 = vmatprep.subr.bf16.mxu0 0
    %309 = vmatpush1.bf16.msra.mxu0 %v278
    %310 = vmatprep.subr.bf16.mxu0 0
    %311 = vmatpush2.bf16.msra.mxu0 0
    %312 = vmatprep.subr.bf16.mxu0 0
    %313 = vmatpush2.bf16.msra.mxu0 0
    %314 = vmatprep.subr.bf16.mxu0 0
    %315 = vmatpush2.bf16.msra.mxu0 0
    %316 = vmatprep.subr.bf16.mxu0 0
    %317 = vmatpush2.bf16.msra.mxu0 0
    %318 = vmatprep.subr.bf16.mxu0 0
    %319 = vmatpush2.bf16.msra.mxu0 0
    %320 = vmatprep.subr.bf16.mxu0 0
    %321 = vmatpush2.bf16.msra.mxu0 0
    %322 = vmatprep.subr.bf16.mxu0 0
    %323 = vmatpush2.bf16.msra.mxu0 0
    %324 = vmatprep.subr.bf16.mxu0 0
    %325 = vmatpush2.bf16.msra.mxu0 0
    %326 = vmatprep.mubr.bf16.mxu0 0
    %327 = vmatmul.mubr.bf16.gmra.mxu0 %v219
    %v328 = vpop.f32.mrf.mxu0
    %v329 = vadd.f32 %v244, %v328
    %v330 = vpop.f32.mrf.mxu0
    %v331 = vpop.f32.mrf.mxu0
    %v332 = vadd.f32 %v244, %v331
    %v333 = vpop.f32.mrf.mxu0
    %334 = vmatprep.mubr.bf16.mxu0 0
    %335 = vmatmul.mubr.bf16.gmra.mxu0 %v220
    %v336 = vpop.f32.mrf.mxu0
    %v337 = vadd.f32 %v244, %v336
    %v338 = vpop.f32.mrf.mxu0
    %v339 = vpop.f32.mrf.mxu0
    %v340 = vadd.f32 %v244, %v339
    %v341 = vpop.f32.mrf.mxu0
    %342 = vmatprep.mubr.bf16.mxu0 0
    %343 = vmatmul.mubr.bf16.gmra.mxu0 %v221
    %v344 = vpop.f32.mrf.mxu0
    %v345 = vadd.f32 %v244, %v344
    %v346 = vpop.f32.mrf.mxu0
    %v347 = vpop.f32.mrf.mxu0
    %v348 = vadd.f32 %v244, %v347
    %v349 = vpop.f32.mrf.mxu0
    %350 = vmatprep.mubr.bf16.mxu0 0
    %351 = vmatmul.mubr.bf16.gmra.mxu0 %v222
    %v352 = vpop.f32.mrf.mxu0
    %v353 = vadd.f32 %v244, %v352
    %v354 = vpop.f32.mrf.mxu0
    %v355 = vpop.f32.mrf.mxu0
    %v356 = vadd.f32 %v244, %v355
    %v357 = vpop.f32.mrf.mxu0
    %358 = vdwg.mxu0
    %v359 = vmax.f32 %v329, 0.0
    %v360 = vmax.f32 %v332, 0.0
    %v361 = vmax.f32 %v337, 0.0
    %v362 = vmax.f32 %v340, 0.0
    %v363 = vmax.f32 %v345, 0.0
    %v364 = vmax.f32 %v348, 0.0
    %v365 = vmax.f32 %v353, 0.0
    %v366 = vmax.f32 %v356, 0.0
    %v367 = vadd.f32 %v63, %v359
    %v368 = vadd.f32 %v64, %v360
    %v369 = vadd.f32 %v65, %v361
    %v370 = vadd.f32 %v66, %v362
    %v371 = vadd.f32 %v67, %v363
    %v372 = vadd.f32 %v68, %v364
    %v373 = vadd.f32 %v69, %v365
    %v374 = vadd.f32 %v70, %v366
    %375 = vst [vmem:[#allocation8] sm:$0xff] %v367
    %376 = vst [vmem:[#allocation8 + $0x8] sm:$0xff] %v368
    %377 = vst [vmem:[#allocation8 + $0x10] sm:$0xff] %v369
    %378 = vst [vmem:[#allocation8 + $0x18] sm:$0xff] %v370
    %379 = vst [vmem:[#allocation8 + $0x20] sm:$0xff] %v371
    %380 = vst [vmem:[#allocation8 + $0x28] sm:$0xff] %v372
    %381 = vst [vmem:[#allocation8 + $0x30] sm:$0xff] %v373
    %382 = vst [vmem:[#allocation8 + $0x38] sm:$0xff] %v374
    // Predicated region
    $region34: #{_fc_res_call.1} parent=1 // pred_check
      _
    $region35: #{_fc_res_call.1} parent=1 // pred_check_branch
      %384 = sbr.rel (0) target = $region37
    $region36: #{_fc_res_call.1} parent=1 // pred_region
      %s386 = ssub.s32 1024, 1024
      %387 = vsyncadd [#allocation4], %s386
      %s388 = sshll.u32 [#allocation8], 4
      %s389 = int_to_ptr.vmem [resolvable:$true] %s388
      %394 = dma.vmem_to_hbm [thread:$0]  %s389, 1024, %s5, [#allocation4], 128, 128, 8
    $region37: #{_fc_res_call.1} parent=1 // pred_fallthru
      _
    // Predicated region
    $region38: #{_fc_res_call.1} parent=1 // pred_check
      _
    $region39: #{_fc_res_call.1} parent=1 // pred_check_branch
      %396 = sbr.rel (0) target = $region41
    $region40: #{_fc_res_call.1} parent=1 // pred_region
      %397 = dma.done [#allocation4], 1024
    $region41: #{_fc_res_call.1} parent=1 // pred_fallthru
      _
    %398 = vsyncpa [#allocation3], 1
    %399 = vsyncpa [#allocation6], 1
    %400 = vsyncpa [#allocation4], 1

</llo_original>
